<compile_context>
chip_gen: v5e
topology: v5e:2x2
jax: 0.10.0
libtpu: 0.0.40
codegen_flags: <defaults>
</compile_context>

<pallas_src>
import functools

import jax
import jax.numpy as jnp
from jax.experimental import pallas as pl
from jax.experimental.pallas import tpu as pltpu

LANE = 128          # lane width of a vreg
MAX_NS_BLK = 128    # max lane-rows (of 128) of spatial per grid step (~64KB*C per tile)


def _corr3d_kernel(q_ref, kw_ref, o_ref, *, scale):
    # q_ref : (1, C, ns_blk, 128)     -- resident across the (innermost) offset axis
    # kw_ref: (1, 1, C, ns_blk, 128)  -- pre-shifted k window for this offset
    # o_ref : (1, 1, ns_blk, 128)
    q = q_ref[...].astype(jnp.float32)        # (1, C, ns, 128)
    kw = kw_ref[...].astype(jnp.float32)      # (1, 1, C, ns, 128)
    prod = q * kw[0]                          # (1, C, ns, 128), full-lane VPU mults
    acc = jnp.sum(prod, axis=1, keepdims=True)   # leading-axis reduce -> VPU adds (no XLU)
    o_ref[...] = (acc * scale).astype(o_ref.dtype)


@functools.partial(jax.jit, static_argnames=("kernel_size",))
def corr3d(q, k, kernel_size=3):
    """q, k: (B, C, H, W, T)  ->  corr: (B, kernel_size**3, H, W, T)."""
    assert kernel_size % 2 == 1, "Corr3D requires an odd kernel_size"
    B, C, H, W, T = q.shape
    pdr = (kernel_size - 1) // 2
    KK = kernel_size ** 3
    HWT = H * W * T
    scale = 1.0 / C

    # Lane-dense spatial factorization: flatten (H,W,T) -> (NS, 128) lanes.
    ns_raw = -(-HWT // LANE)
    ns_blk = ns_raw if ns_raw <= MAX_NS_BLK else MAX_NS_BLK
    s_tiles = -(-ns_raw // ns_blk)
    NS = s_tiles * ns_blk
    HWT_pad = NS * LANE

    # --- wrapper layout plumbing (pure XLA glue, no transposes of q/k) -------
    k_pad = jnp.pad(k, ((0, 0), (0, 0), (pdr, pdr), (pdr, pdr), (pdr, pdr)))
    wins = []
    for dh in range(kernel_size):
        for dw in range(kernel_size):
            for dt in range(kernel_size):
                wins.append(
                    k_pad[:, :, dh:dh + H, dw:dw + W, dt:dt + T].reshape(B, C, HWT))
    k_win = jnp.stack(wins, axis=1)          # (B, KK, C, HWT)
    q_flat = q.reshape(B, C, HWT)

    if HWT_pad != HWT:
        pad = HWT_pad - HWT
        q_flat = jnp.pad(q_flat, ((0, 0), (0, 0), (0, pad)))
        k_win = jnp.pad(k_win, ((0, 0), (0, 0), (0, 0), (0, pad)))

    q_r = q_flat.reshape(B, C, NS, LANE)             # (B, C, NS, 128)
    k_win_r = k_win.reshape(B, KK, C, NS, LANE)      # (B, KK, C, NS, 128)

    kernel = functools.partial(_corr3d_kernel, scale=scale)

    out = pl.pallas_call(
        kernel,
        out_shape=jax.ShapeDtypeStruct((B, KK, NS, LANE), q.dtype),
        grid=(B, s_tiles, KK),   # offsets innermost so the q tile stays resident
        in_specs=[
            pl.BlockSpec((1, C, ns_blk, LANE), lambda b, s, o: (b, 0, s, 0)),
            pl.BlockSpec((1, 1, C, ns_blk, LANE), lambda b, s, o: (b, o, 0, s, 0)),
        ],
        out_specs=pl.BlockSpec((1, 1, ns_blk, LANE), lambda b, s, o: (b, o, s, 0)),
        compiler_params=pltpu.CompilerParams(
            dimension_semantics=("parallel", "parallel", "parallel"),
            vmem_limit_bytes=32 * 1024 * 1024,
        ),
    )(q_r, k_win_r)

    out = out.reshape(B, KK, HWT_pad)[:, :, :HWT].reshape(B, KK, H, W, T)
    return out


def corr3d_ref(q, k, kernel_size=3):
    """Pure-JAX reference with identical semantics (for verification)."""
    B, C, H, W, T = q.shape
    pdr = (kernel_size - 1) // 2
    scale = 1.0 / C
    qs = jnp.transpose(q, (0, 2, 3, 4, 1)) * scale
    kp = jnp.pad(jnp.transpose(k, (0, 2, 3, 4, 1)),
                 ((0, 0), (pdr, pdr), (pdr, pdr), (pdr, pdr), (0, 0)))
    outs = []
    for dh in range(kernel_size):
        for dw in range(kernel_size):
            for dt in range(kernel_size):
                outs.append(jnp.sum(
                    qs * kp[:, dh:dh + H, dw:dw + W, dt:dt + T, :], axis=-1))
    return jnp.stack(outs, axis=1)   # (B, K^3, H, W, T)


if __name__ == "__main__":
    key = jax.random.PRNGKey(0)
    kq, kk = jax.random.split(key)
    B, C, H, W, T = 2, 8, 8, 8, 8     # small shapes consistent with the module
    q = jax.random.normal(kq, (B, C, H, W, T), dtype=jnp.float32)
    k = jax.random.normal(kk, (B, C, H, W, T), dtype=jnp.float32)

    out = corr3d(q, k, kernel_size=3)
    out = jax.block_until_ready(out)

    assert out.shape == (B, 27, H, W, T), out.shape
    ref = corr3d_ref(q, k, kernel_size=3)
    assert jnp.allclose(out, ref, atol=1e-4, rtol=1e-4), "mismatch vs reference"

    print("KERNEL_OK")
</pallas_src>

<mosaic_0001>
module attributes {stable_mosaic.version = 11 : i64} {
  func.func @_corr3d_kernel(%arg0: i32, %arg1: i32, %arg2: i32, %arg3: memref<1x8x4x128xf32, #tpu.memory_space<vmem>>, %arg4: memref<1x1x8x4x128xf32, #tpu.memory_space<vmem>>, %arg5: memref<1x1x4x128xf32, #tpu.memory_space<vmem>>) attributes {dimension_semantics = [#tpu.dimension_semantics<parallel>, #tpu.dimension_semantics<parallel>, #tpu.dimension_semantics<parallel>], iteration_bounds = array<i64: 2, 1, 27>, scalar_prefetch = 0 : i64, scratch_operands = 0 : i64, tpu.core_type = #tpu.core_type<tc>, window_params = [{transform_indices = @transform_0, window_bounds = array<i64: 1, 8, 4, 128>}, {transform_indices = @transform_1, window_bounds = array<i64: 1, 1, 8, 4, 128>}, {transform_indices = @transform_2, window_bounds = array<i64: 1, 1, 4, 128>}]} {
    %c0 = arith.constant 0 : index
    %c0_0 = arith.constant 0 : index
    %c0_1 = arith.constant 0 : index
    %c0_2 = arith.constant 0 : index
    %0 = vector.load %arg3[%c0, %c0_0, %c0_1, %c0_2] : memref<1x8x4x128xf32, #tpu.memory_space<vmem>>, vector<1x8x4x128xf32>
    %c0_3 = arith.constant 0 : index
    %c0_4 = arith.constant 0 : index
    %c0_5 = arith.constant 0 : index
    %c0_6 = arith.constant 0 : index
    %c0_7 = arith.constant 0 : index
    %1 = vector.load %arg4[%c0_3, %c0_4, %c0_5, %c0_6, %c0_7] : memref<1x1x8x4x128xf32, #tpu.memory_space<vmem>>, vector<1x1x8x4x128xf32>
    %2 = vector.shape_cast %1 : vector<1x1x8x4x128xf32> to vector<1x8x4x128xf32>
    %3 = arith.mulf %0, %2 : vector<1x8x4x128xf32>
    %cst = arith.constant dense<0.000000e+00> : vector<1x4x128xf32>
    %4 = vector.multi_reduction <add>, %3, %cst [1] : vector<1x8x4x128xf32> to vector<1x4x128xf32>
    %5 = vector.shape_cast %4 : vector<1x4x128xf32> to vector<1x1x4x128xf32>
    %cst_8 = arith.constant 1.250000e-01 : f32
    %6 = vector.broadcast %cst_8 : f32 to vector<1x1x4x128xf32>
    %7 = arith.mulf %5, %6 : vector<1x1x4x128xf32>
    %c0_9 = arith.constant 0 : index
    %c0_10 = arith.constant 0 : index
    %c0_11 = arith.constant 0 : index
    %c0_12 = arith.constant 0 : index
    %8 = vector.load %arg5[%c0_9, %c0_10, %c0_11, %c0_12] : memref<1x1x4x128xf32, #tpu.memory_space<vmem>>, vector<1x1x4x128xf32>
    tpu.vector_store %arg5[%c0_9, %c0_10, %c0_11, %c0_12], %7 {strides = array<i32>} : memref<1x1x4x128xf32, #tpu.memory_space<vmem>>, vector<1x1x4x128xf32>,
    return
  }
  func.func @transform_0(%arg0: i32, %arg1: i32, %arg2: i32) -> (i32, i32, i32, i32) {
    %c0_i32 = arith.constant 0 : i32
    %c0_i32_0 = arith.constant 0 : i32
    %c0_i32_1 = arith.constant 0 : i32
    return %arg0, %c0_i32, %arg1, %c0_i32_0 : i32, i32, i32, i32
  }
  func.func @transform_1(%arg0: i32, %arg1: i32, %arg2: i32) -> (i32, i32, i32, i32, i32) {
    %c0_i32 = arith.constant 0 : i32
    %c0_i32_0 = arith.constant 0 : i32
    %c0_i32_1 = arith.constant 0 : i32
    return %arg0, %arg2, %c0_i32, %arg1, %c0_i32_0 : i32, i32, i32, i32, i32
  }
  func.func @transform_2(%arg0: i32, %arg1: i32, %arg2: i32) -> (i32, i32, i32, i32) {
    %c0_i32 = arith.constant 0 : i32
    %c0_i32_0 = arith.constant 0 : i32
    return %arg0, %arg2, %arg1, %c0_i32 : i32, i32, i32, i32
  }
}

</mosaic_0001>

<llo_original>
// kernel: corr3d.1
$region0: #{corr3d.1}
  #allocation0 [shape = 'u32[]', space=smem, size = 0x4, offset = 0x4, fixed_abs, tag = 'smem constant byte address 0x4 - core index']
  #allocation1 [shape = 'u32[72,128]{1,0:T(1,128)}', space=vmem, size = 0x9000, scoped, tag = 'internal scratch']
  %s0 = inlined_call_operand.vmem [shape: f32[2,8,4,128], index: 0, kind: input, shape index: {}]
  %s1 = inlined_call_operand.vmem [shape: f32[2,27,8,4,128], index: 1, kind: input, shape index: {}]
  %s2 = inlined_call_operand.vmem [shape: f32[2,27,4,128], index: 2, kind: output, shape index: {}]
  %s3 = sld [smem:[#allocation0]]
  $region41: #{corr3d.1} parent=0
    _
  %s5 = ssub.s32 1, %s3
  %s6 = scalar_select 0, %s5, %s3
  loop: start=0, step=1, limit=56
  $region2: #{corr3d.1} parent=0 // loop_pre_header
    _
  $region3: #{corr3d.1} parent=0 // loop_header
    %s8 = sphi 0, %s12
    %p9 = scmp.ge.s32.totalorder %s8, 56
    %s15 = sphi 0, %s34
    %s16 = sphi 0, %s30
    %s17 = sphi 0, %s26
    %s18 = sphi 0, %s15
    %s19 = sphi 0, %s16
    %s20 = sphi 0, %s17
    %s21 = sphi 0, %s18
    %s22 = sphi 0, %s19
    %s23 = sphi 0, %s20
    %s39 = sphi 0, %s41
    %s42 = sphi 0, %s39
    %s43 = sphi 0, %s42
    %s59 = sphi 0, %s43
    %s69 = sphi 0, %s71
    %s72 = sphi 0, %s69
    %s73 = sphi 0, %s72
    %s89 = sphi 0, %s73
    %s99 = sphi 0, %s101
    %s102 = sphi 0, %s99
    %s103 = sphi 0, %s102
    %s119 = sphi 0, %s103
  $region4: #{corr3d.1} parent=0 // loop_header_branch
    %11 = sbr.rel (%p9) target = $region8
  $region5: #{corr3d.1} parent=0 // loop_body
    %s13 = ssub.s32 %s8, 1
    %s14 = ssub.s32 %s8, 2
    %s24 = sadd.s32 1, %s17
    %p25 = scmp.ge.s32.totalorder %s24, 27
    %s26 = scalar_select %p25, 0, %s24
    %s27 = sadd.s32 1, %s16
    %s28 = scalar_select %p25, %s27, %s16
    %p29 = scmp.ge.s32.totalorder %s28, 1
    %s30 = scalar_select %p29, 0, %s28
    %s31 = sadd.s32 1, %s15
    %s32 = scalar_select %p29, %s31, %s15
    %p33 = scmp.ge.s32.totalorder %s32, 2
    %s34 = scalar_select %p33, 0, %s32
    %s35 = ssub.s32 %s15, %s34
    %s36 = ssub.s32 %s16, %s30
    %s37 = sor.u32 %s35, %s36
    %p38 = scmp.eq.s32.totalorder %s37, 0
    %s40 = sadd.s32 %s39, 1
    %s41 = scalar_select %p38, %s39, %s40
    %p44 = pneg %p38
    %p45 = scmp.eq.s32.totalorder %s8, 53
    %p46 = por %p44, %p45
    %p47 = scmp.ne.s32.totalorder %s39, %s42
    %p48 = scmp.eq.s32.totalorder %s8, 0
    %p49 = por %p47, %p48
    %p50 = scmp.ne.s32.totalorder %s39, %s42
    %p51 = scmp.eq.s32.totalorder %s13, 53
    %p52 = por %p50, %p51
    %p53 = scmp.ne.s32.totalorder %s42, %s43
    %p54 = scmp.eq.s32.totalorder %s13, 0
    %p55 = por %p53, %p54
    %p56 = scmp.ne.s32.totalorder %s42, %s43
    %p57 = scmp.eq.s32.totalorder %s14, 53
    %p58 = por %p56, %p57
    %p60 = scmp.ne.s32.totalorder %s43, %s59
    %p61 = scmp.eq.s32.totalorder %s14, 0
    %p62 = por %p60, %p61
    %s63 = ssub.s32 %s15, %s34
    %s64 = ssub.s32 %s17, %s26
    %s65 = sor.u32 %s63, %s64
    %s66 = ssub.s32 %s16, %s30
    %s67 = sor.u32 %s65, %s66
    %p68 = scmp.eq.s32.totalorder %s67, 0
    %s70 = sadd.s32 %s69, 1
    %s71 = scalar_select %p68, %s69, %s70
    %p74 = pneg %p68
    %p75 = scmp.eq.s32.totalorder %s8, 53
    %p76 = por %p74, %p75
    %p77 = scmp.ne.s32.totalorder %s69, %s72
    %p78 = scmp.eq.s32.totalorder %s8, 0
    %p79 = por %p77, %p78
    %p80 = scmp.ne.s32.totalorder %s69, %s72
    %p81 = scmp.eq.s32.totalorder %s13, 53
    %p82 = por %p80, %p81
    %p83 = scmp.ne.s32.totalorder %s72, %s73
    %p84 = scmp.eq.s32.totalorder %s13, 0
    %p85 = por %p83, %p84
    %p86 = scmp.ne.s32.totalorder %s72, %s73
    %p87 = scmp.eq.s32.totalorder %s14, 53
    %p88 = por %p86, %p87
    %p90 = scmp.ne.s32.totalorder %s73, %s89
    %p91 = scmp.eq.s32.totalorder %s14, 0
    %p92 = por %p90, %p91
    %s93 = ssub.s32 %s15, %s34
    %s94 = ssub.s32 %s17, %s26
    %s95 = sor.u32 %s93, %s94
    %s96 = ssub.s32 %s16, %s30
    %s97 = sor.u32 %s95, %s96
    %p98 = scmp.eq.s32.totalorder %s97, 0
    %s100 = sadd.s32 %s99, 1
    %s101 = scalar_select %p98, %s99, %s100
    %p104 = pneg %p98
    %p105 = scmp.eq.s32.totalorder %s8, 53
    %p106 = por %p104, %p105
    %p107 = scmp.ne.s32.totalorder %s99, %s102
    %p108 = scmp.eq.s32.totalorder %s8, 0
    %p109 = por %p107, %p108
    %p110 = scmp.ne.s32.totalorder %s99, %s102
    %p111 = scmp.eq.s32.totalorder %s13, 53
    %p112 = por %p110, %p111
    %p113 = scmp.ne.s32.totalorder %s102, %s103
    %p114 = scmp.eq.s32.totalorder %s13, 0
    %p115 = por %p113, %p114
    %p116 = scmp.ne.s32.totalorder %s102, %s103
    %p117 = scmp.eq.s32.totalorder %s14, 53
    %p118 = por %p116, %p117
    %p120 = scmp.ne.s32.totalorder %s103, %s119
    %p121 = scmp.eq.s32.totalorder %s14, 0
    %p122 = por %p120, %p121
    %p123 = scmp.le.s32.totalorder 1, %s8
    %p124 = scmp.lt.s32.totalorder %s8, 55
    %p125 = pnand %p123, %p124
    %p126 = pneg %p125
    // Predicated region
    $region9: #{corr3d.1} parent=5 // pred_check
      _
    $region10: #{corr3d.1} parent=5 // pred_check_branch
      %128 = sbr.rel (%p125) target = $region12
    $region11: #{corr3d.1} parent=5 // pred_region
      %s129 = ssub.s32 %s8, 1
    $region12: #{corr3d.1} parent=5 // pred_fallthru
      _
    %p130 = scmp.lt.s32.totalorder %s8, 54
    // Predicated region
    $region13: #{corr3d.1} parent=5 // pred_check
      %p131 = pneg %p130
    $region14: #{corr3d.1} parent=5 // pred_check_branch
      %133 = sbr.rel (%p131) target = $region16
    $region15: #{corr3d.1} parent=5 // pred_region
      // Predicated region
      $region17: #{corr3d.1} parent=15 // pred_check
        %p134 = pneg %p49
      $region18: #{corr3d.1} parent=15 // pred_check_branch
        %136 = sbr.rel (%p134) target = $region20
      $region19: #{corr3d.1} parent=15 // pred_region
        %p137 = scmp.lt.s32.totalorder %s15, 1
        %s138 = scalar_select %p137, %s15, 1
        %p139 = scmp.lt.s32.totalorder %s16, 0
        %s140 = scalar_select %p139, %s16, 0
        %s141 = smul.addr %s138, 8
        %s142 = sadd.s32 %s140, %s141
        %s143 = smul.addr %s142, 4
        %s144 = scalar_lea.vmem %s0, %s143
      $region20: #{corr3d.1} parent=15 // pred_fallthru
        _
      // Predicated region
      $region21: #{corr3d.1} parent=15 // pred_check
        %p145 = pneg %p79
      $region22: #{corr3d.1} parent=15 // pred_check_branch
        %147 = sbr.rel (%p145) target = $region24
      $region23: #{corr3d.1} parent=15 // pred_region
        %p148 = scmp.lt.s32.totalorder %s15, 1
        %s149 = scalar_select %p148, %s15, 1
        %p150 = scmp.lt.s32.totalorder %s17, 26
        %s151 = scalar_select %p150, %s17, 26
        %p152 = scmp.lt.s32.totalorder %s16, 0
        %s153 = scalar_select %p152, %s16, 0
        %s154 = smul.addr %s151, 8
        %s155 = sadd.s32 %s153, %s154
        %s156 = smul.addr %s149, 216
        %s157 = sadd.s32 %s155, %s156
        %s158 = smul.addr %s157, 4
        %s159 = scalar_lea.vmem %s1, %s158
      $region24: #{corr3d.1} parent=15 // pred_fallthru
        _
    $region16: #{corr3d.1} parent=5 // pred_fallthru
      _
    %p160 = scmp.le.s32.totalorder 1, %s8
    %p161 = scmp.lt.s32.totalorder %s8, 55
    %p162 = pnand %p160, %p161
    %p163 = pneg %p162
    // Predicated region
    $region25: #{corr3d.1} parent=5 // pred_check
      _
    $region26: #{corr3d.1} parent=5 // pred_check_branch
      %165 = sbr.rel (%p162) target = $region28
    $region27: #{corr3d.1} parent=5 // pred_region
      %s166 = ssub.s32 %s8, 1
      %p167 = scmp.lt.s32.totalorder %s18, 1
      %s168 = scalar_select %p167, %s18, 1
      %p169 = scmp.lt.s32.totalorder %s19, 0
      %s170 = scalar_select %p169, %s19, 0
      %s171 = smul.addr %s168, 8
      %s172 = sadd.s32 %s170, %s171
      %s173 = smul.addr %s172, 4
      %s174 = scalar_lea.vmem %s0, %s173
      %p175 = pneg %p55
      %p176 = pneg %p52
      %p177 = scmp.lt.s32.totalorder %s18, 1
      %s178 = scalar_select %p177, %s18, 1
      %p179 = scmp.lt.s32.totalorder %s20, 26
      %s180 = scalar_select %p179, %s20, 26
      %p181 = scmp.lt.s32.totalorder %s19, 0
      %s182 = scalar_select %p181, %s19, 0
      %s183 = smul.addr %s180, 8
      %s184 = sadd.s32 %s182, %s183
      %s185 = smul.addr %s178, 216
      %s186 = sadd.s32 %s184, %s185
      %s187 = smul.addr %s186, 4
      %s188 = scalar_lea.vmem %s1, %s187
      %p189 = pneg %p85
      %p190 = pneg %p82
      %p191 = pneg %p115
      %p192 = pneg %p112
      %p193 = scmp.lt.s32.totalorder %s18, 1
      %s194 = scalar_select %p193, %s18, 1
      %p195 = scmp.lt.s32.totalorder %s20, 26
      %s196 = scalar_select %p195, %s20, 26
      %p197 = scmp.lt.s32.totalorder %s19, 0
      %s198 = scalar_select %p197, %s19, 0
      %s199 = sadd.s32 %s198, %s196
      %s200 = smul.addr %s194, 27
      %s201 = sadd.s32 %s199, %s200
      %s202 = smul.addr %s201, 4
      %s203 = scalar_lea.vmem %s2, %s202
      %p204 = scmp.lt.s32.totalorder %s18, 1
      %s205 = scalar_select %p204, %s18, 1
      %p206 = scmp.lt.s32.totalorder %s19, 0
      %s207 = scalar_select %p206, %s19, 0
      %s208 = smul.addr %s205, 8
      %s209 = sadd.s32 %s207, %s208
      %s210 = smul.addr %s209, 4
      %s211 = scalar_lea.vmem %s0, %s210
      %p212 = scmp.lt.s32.totalorder %s18, 1
      %s213 = scalar_select %p212, %s18, 1
      %p214 = scmp.lt.s32.totalorder %s20, 26
      %s215 = scalar_select %p214, %s20, 26
      %p216 = scmp.lt.s32.totalorder %s19, 0
      %s217 = scalar_select %p216, %s19, 0
      %s218 = smul.addr %s215, 8
      %s219 = sadd.s32 %s217, %s218
      %s220 = smul.addr %s213, 216
      %s221 = sadd.s32 %s219, %s220
      %s222 = smul.addr %s221, 4
      %s223 = scalar_lea.vmem %s1, %s222
      %p224 = scmp.lt.s32.totalorder %s18, 1
      %s225 = scalar_select %p224, %s18, 1
      %p226 = scmp.lt.s32.totalorder %s20, 26
      %s227 = scalar_select %p226, %s20, 26
      %p228 = scmp.lt.s32.totalorder %s19, 0
      %s229 = scalar_select %p228, %s19, 0
      %s230 = sadd.s32 %s229, %s227
      %s231 = smul.addr %s225, 27
      %s232 = sadd.s32 %s230, %s231
      %s233 = smul.addr %s232, 4
      %s234 = scalar_lea.vmem %s2, %s233
      %v235 = vld [vmem:[%s211] sm:$0xf]
      %v236 = vld [vmem:[%s211 + $0x4] sm:$0xf]
      %v237 = vld [vmem:[%s211 + $0x8] sm:$0xf]
      %v238 = vld [vmem:[%s211 + $0xc] sm:$0xf]
      %v239 = vld [vmem:[%s211 + $0x10] sm:$0xf]
      %v240 = vld [vmem:[%s211 + $0x14] sm:$0xf]
      %v241 = vld [vmem:[%s211 + $0x18] sm:$0xf]
      %v242 = vld [vmem:[%s211 + $0x1c] sm:$0xf]
      %v243 = vld [vmem:[%s223] sm:$0xf]
      %v244 = vld [vmem:[%s223 + $0x4] sm:$0xf]
      %v245 = vld [vmem:[%s223 + $0x8] sm:$0xf]
      %v246 = vld [vmem:[%s223 + $0xc] sm:$0xf]
      %v247 = vld [vmem:[%s223 + $0x10] sm:$0xf]
      %v248 = vld [vmem:[%s223 + $0x14] sm:$0xf]
      %v249 = vld [vmem:[%s223 + $0x18] sm:$0xf]
      %v250 = vld [vmem:[%s223 + $0x1c] sm:$0xf]
      %v251 = vmul.f32 %v235, %v243
      %v252 = vmul.f32 %v236, %v244
      %v253 = vmul.f32 %v237, %v245
      %v254 = vmul.f32 %v238, %v246
      %v255 = vmul.f32 %v239, %v247
      %v256 = vmul.f32 %v240, %v248
      %v257 = vmul.f32 %v241, %v249
      %v258 = vmul.f32 %v242, %v250
      %vm259 = vcmask 1043456
      %v260 = vsel %vm259, %v251, 0.0
      %v261 = vsel %vm259, %v252, 0.0
      %v262 = vadd.f32 %v260, %v261
      %v263 = vsel %vm259, %v253, 0.0
      %v264 = vadd.f32 %v262, %v263
      %v265 = vsel %vm259, %v254, 0.0
      %v266 = vadd.f32 %v264, %v265
      %v267 = vsel %vm259, %v255, 0.0
      %v268 = vadd.f32 %v266, %v267
      %v269 = vsel %vm259, %v256, 0.0
      %v270 = vadd.f32 %v268, %v269
      %v271 = vsel %vm259, %v257, 0.0
      %v272 = vadd.f32 %v270, %v271
      %v273 = vsel %vm259, %v258, 0.0
      %v274 = vadd.f32 %v272, %v273
      %v275 = vmul.f32 %v274, 0.125
      %276 = vst [vmem:[%s234] sm:$0xf] %v275
      %p277 = scmp.lt.s32.totalorder %s18, 1
      %s278 = scalar_select %p277, %s18, 1
      %p279 = scmp.lt.s32.totalorder %s20, 26
      %s280 = scalar_select %p279, %s20, 26
      %p281 = scmp.lt.s32.totalorder %s19, 0
      %s282 = scalar_select %p281, %s19, 0
      %s283 = sadd.s32 %s282, %s280
      %s284 = smul.addr %s278, 27
      %s285 = sadd.s32 %s283, %s284
      %s286 = smul.addr %s285, 4
      %s287 = scalar_lea.vmem %s2, %s286
      // Predicated region
      $region29: #{corr3d.1} parent=27 // pred_check
        %p288 = pneg %p112
      $region30: #{corr3d.1} parent=27 // pred_check_branch
        %290 = sbr.rel (%p288) target = $region32
      $region31: #{corr3d.1} parent=27 // pred_region
        _
      $region32: #{corr3d.1} parent=27 // pred_fallthru
        _
    $region28: #{corr3d.1} parent=5 // pred_fallthru
      _
    %p291 = scmp.le.s32.totalorder 2, %s8
    // Predicated region
    $region33: #{corr3d.1} parent=5 // pred_check
      %p292 = pneg %p291
    $region34: #{corr3d.1} parent=5 // pred_check_branch
      %294 = sbr.rel (%p292) target = $region36
    $region35: #{corr3d.1} parent=5 // pred_region
      %s295 = ssub.s32 %s8, 2
      // Predicated region
      $region37: #{corr3d.1} parent=35 // pred_check
        %p296 = pneg %p118
      $region38: #{corr3d.1} parent=35 // pred_check_branch
        %298 = sbr.rel (%p296) target = $region40
      $region39: #{corr3d.1} parent=35 // pred_region
        %p299 = scmp.lt.s32.totalorder %s21, 1
        %s300 = scalar_select %p299, %s21, 1
        %p301 = scmp.lt.s32.totalorder %s23, 26
        %s302 = scalar_select %p301, %s23, 26
        %p303 = scmp.lt.s32.totalorder %s22, 0
        %s304 = scalar_select %p303, %s22, 0
        %s305 = sadd.s32 %s304, %s302
        %s306 = smul.addr %s300, 27
        %s307 = sadd.s32 %s305, %s306
        %s308 = smul.addr %s307, 4
        %s309 = scalar_lea.vmem %s2, %s308
      $region40: #{corr3d.1} parent=35 // pred_fallthru
        _
    $region36: #{corr3d.1} parent=5 // pred_fallthru
      _
  $region6: #{corr3d.1} parent=0 // loop_footer
    %s12 = sadd.s32 1, %s8
  $region7: #{corr3d.1} parent=0 // loop_footer_branch
    %7 = sbr.rel target = $region3
  $region8: #{corr3d.1} parent=0 // loop_exit
    _

</llo_original>
